<compile_context>
chip_gen: v6e
topology: v6e:2x2x1
jax: 0.10.0
libtpu: 0.0.40
codegen_flags: <defaults>
</compile_context>

<pallas_src>
import functools

import jax
import jax.numpy as jnp
from jax.experimental import pallas as pl
from jax.experimental.pallas import tpu as pltpu


def _encoder_kernel(x_ref, w_ref, b_ref, o_ref, *, l_relu: int):
    # x_ref: (TM, D) VMEM tile, w_ref: (D, N), b_ref: (1, N), o_ref: (TM, N)
    y = jnp.dot(x_ref[...], w_ref[...], preferred_element_type=jnp.float32)
    y = y + b_ref[...]                       # broadcast (1, N) over rows
    if l_relu == 1:
        y = jnp.maximum(y, 0.2 * y)          # LeakyReLU(0.2): single vmax
    o_ref[...] = y.astype(o_ref.dtype)


def _round_up(x: int, m: int) -> int:
    return (x + m - 1) // m * m


def _choose_tm(B: int) -> int:
    """Batch-tile rows: multiple of 8, >=2 grid steps when B is large, <=8192."""
    TM_CAP = 8192  # 8192*32*4*2 (x, double-buffered) + 8192*16*4*2 (out) ~= 3 MiB
    if B <= 8:
        return B                     # single block equal to the full tiny batch
    return min(TM_CAP, _round_up(pl.cdiv(B, 2), 8))


# Below this many rows the fused XLA dot+bias+max path beats the custom call.
_SMALL_BATCH_THRESHOLD = 1024


@functools.partial(jax.jit, static_argnames=("l_relu", "force_pallas"))
def encoder_forward(x, weight, bias, *, l_relu: int = 1, force_pallas: bool = False):
    """x: (B, emb_dim); weight: (bottleneck_dim, emb_dim) [PyTorch layout]; bias: (bottleneck_dim,)."""
    B, D = x.shape
    N = weight.shape[0]

    if (not force_pallas) and B < _SMALL_BATCH_THRESHOLD:
        # Small-batch fallback: launch overhead would dominate the Pallas path.
        y = x @ weight.T + bias
        if l_relu == 1:
            y = jnp.maximum(y, 0.2 * y)
        return y

    # Hoisted glue — constant-folded / fused once under jit.
    w_t = weight.T                # (D, N): kernel does a plain (TM, D) @ (D, N)
    b2 = bias.reshape(1, N)

    TM = _choose_tm(B)
    grid = (pl.cdiv(B, TM),)      # ragged last block handled by Pallas (masked writes)

    kernel = functools.partial(_encoder_kernel, l_relu=l_relu)

    cost = pl.CostEstimate(
        flops=2 * B * D * N,
        transcendentals=0,
        bytes_accessed=4 * (B * D + D * N + N + B * N),
    )

    # NOTE: pipeline_mode=pl.Buffered(3) on the x spec is a possible follow-up
    # if profiling still shows exposed DMA after the larger tiles; not needed yet.
    out = pl.pallas_call(
        kernel,
        out_shape=jax.ShapeDtypeStruct((B, N), x.dtype),
        grid_spec=pltpu.PrefetchScalarGridSpec(
            num_scalar_prefetch=0,
            grid=grid,
            in_specs=[
                pl.BlockSpec((TM, D), lambda i: (i, 0)),   # batch-tiled, pipelined
                pl.BlockSpec((D, N), lambda i: (0, 0)),    # weight VMEM-resident
                pl.BlockSpec((1, N), lambda i: (0, 0)),    # bias VMEM-resident
            ],
            out_specs=pl.BlockSpec((TM, N), lambda i: (i, 0)),
        ),
        compiler_params=pltpu.CompilerParams(
            dimension_semantics=("parallel",),  # independent batch tiles → v7x megacore
        ),
        cost_estimate=cost,
    )(x, w_t, b2)

    return out


def _reference(x, weight, bias, l_relu):
    y = x @ weight.T + bias
    if l_relu == 1:
        y = jnp.where(y >= 0, y, 0.2 * y)
    return y


if __name__ == "__main__":
    # Small shapes consistent with the module: emb_dim=32, emb_dim_autoenc=16, batch=8
    emb_dim = 32
    bottleneck_dim = 16
    batch = 8
    l_relu = 1

    key = jax.random.PRNGKey(0)
    kx, kw, kb = jax.random.split(key, 3)

    # PyTorch nn.Linear default init: U(-1/sqrt(in_features), 1/sqrt(in_features))
    bound = 1.0 / (emb_dim ** 0.5)
    weight = jax.random.uniform(kw, (bottleneck_dim, emb_dim),
                                minval=-bound, maxval=bound, dtype=jnp.float32)
    bias = jax.random.uniform(kb, (bottleneck_dim,),
                              minval=-bound, maxval=bound, dtype=jnp.float32)
    x = jax.random.normal(kx, (batch, emb_dim), dtype=jnp.float32)

    # 1) Pallas path at the nominal small shape (forced past the fallback).
    out = jax.block_until_ready(encoder_forward(x, weight, bias,
                                                l_relu=l_relu, force_pallas=True))
    ref = _reference(x, weight, bias, l_relu)
    assert out.shape == (batch, bottleneck_dim)
    assert jnp.allclose(out, ref, atol=1e-5, rtol=1e-5), "mismatch vs reference"

    # 2) Pallas path with a ragged last block + >=2 grid steps (B=37 -> TM=24, grid=2).
    x2 = jax.random.normal(kx, (37, emb_dim), dtype=jnp.float32)
    out2 = jax.block_until_ready(encoder_forward(x2, weight, bias,
                                                 l_relu=l_relu, force_pallas=True))
    ref2 = _reference(x2, weight, bias, l_relu)
    assert out2.shape == (37, bottleneck_dim)
    assert jnp.allclose(out2, ref2, atol=1e-5, rtol=1e-5), "mismatch vs reference (ragged block)"

    # 3) Default routing (small batch -> fused XLA fallback) is also correct.
    out3 = jax.block_until_ready(encoder_forward(x, weight, bias, l_relu=l_relu))
    assert jnp.allclose(out3, ref, atol=1e-5, rtol=1e-5), "mismatch vs reference (fallback)"

    print("KERNEL_OK")
</pallas_src>

<mosaic_0001>
module attributes {stable_mosaic.version = 11 : i64} {
  func.func @_encoder_kernel(%arg0: i32, %arg1: memref<8x32xf32, #tpu.memory_space<vmem>>, %arg2: memref<32x16xf32, #tpu.memory_space<vmem>>, %arg3: memref<1x16xf32, #tpu.memory_space<vmem>>, %arg4: memref<8x16xf32, #tpu.memory_space<vmem>>) attributes {dimension_semantics = [#tpu.dimension_semantics<parallel>], iteration_bounds = array<i64: 1>, scalar_prefetch = 0 : i64, scratch_operands = 0 : i64, tpu.core_type = #tpu.core_type<tc>, window_params = [{transform_indices = @transform_0, window_bounds = array<i64: 8, 32>}, {pipeline_mode = #tpu.pipeline_mode<synchronous>, transform_indices = @transform_1, window_bounds = array<i64: 32, 16>}, {pipeline_mode = #tpu.pipeline_mode<synchronous>, transform_indices = @transform_2, window_bounds = array<i64: 1, 16>}, {transform_indices = @transform_3, window_bounds = array<i64: 8, 16>}]} {
    %c0 = arith.constant 0 : index
    %c0_0 = arith.constant 0 : index
    %0 = vector.load %arg1[%c0, %c0_0] : memref<8x32xf32, #tpu.memory_space<vmem>>, vector<8x32xf32>
    %c0_1 = arith.constant 0 : index
    %c0_2 = arith.constant 0 : index
    %1 = vector.load %arg2[%c0_1, %c0_2] : memref<32x16xf32, #tpu.memory_space<vmem>>, vector<32x16xf32>
    %cst = arith.constant dense<0.000000e+00> : vector<8x16xf32>
    %2 = tpu.matmul %0, %1, %cst {dimension_numbers = #tpu.dot_dimension_numbers<[1], [0], [0], [1], [0, 0, 1, 1], [], []>} : vector<8x32xf32>, vector<32x16xf32>, vector<8x16xf32> -> vector<8x16xf32>
    %c0_3 = arith.constant 0 : index
    %c0_4 = arith.constant 0 : index
    %3 = vector.load %arg3[%c0_3, %c0_4] : memref<1x16xf32, #tpu.memory_space<vmem>>, vector<1x16xf32>
    %4 = vector.broadcast %3 : vector<1x16xf32> to vector<8x16xf32>
    %5 = arith.addf %2, %4 : vector<8x16xf32>
    %cst_5 = arith.constant 2.000000e-01 : f32
    %6 = vector.broadcast %cst_5 : f32 to vector<8x16xf32>
    %7 = arith.mulf %6, %5 : vector<8x16xf32>
    %8 = arith.maximumf %5, %7 : vector<8x16xf32>
    %c0_6 = arith.constant 0 : index
    %c0_7 = arith.constant 0 : index
    %9 = vector.load %arg4[%c0_6, %c0_7] : memref<8x16xf32, #tpu.memory_space<vmem>>, vector<8x16xf32>
    tpu.vector_store %arg4[%c0_6, %c0_7], %8 {strides = array<i32>} : memref<8x16xf32, #tpu.memory_space<vmem>>, vector<8x16xf32>,
    return
  }
  func.func @transform_0(%arg0: i32) -> (i32, i32) {
    %c0_i32 = arith.constant 0 : i32
    %c0_i32_0 = arith.constant 0 : i32
    return %arg0, %c0_i32 : i32, i32
  }
  func.func @transform_1(%arg0: i32) -> (i32, i32) {
    %c0_i32 = arith.constant 0 : i32
    %c0_i32_0 = arith.constant 0 : i32
    %c0_i32_1 = arith.constant 0 : i32
    return %c0_i32, %c0_i32_0 : i32, i32
  }
  func.func @transform_2(%arg0: i32) -> (i32, i32) {
    %c0_i32 = arith.constant 0 : i32
    %c0_i32_0 = arith.constant 0 : i32
    %c0_i32_1 = arith.constant 0 : i32
    return %c0_i32, %c0_i32_0 : i32, i32
  }
  func.func @transform_3(%arg0: i32) -> (i32, i32) {
    %c0_i32 = arith.constant 0 : i32
    %c0_i32_0 = arith.constant 0 : i32
    return %arg0, %c0_i32 : i32, i32
  }
}

</mosaic_0001>

<llo_original>
// kernel: encoder_forward.1
$region0: #{encoder_forward.1}
  #allocation0 [shape = 'u32[]', space=smem, size = 0x4, offset = 0x4, fixed_abs, tag = 'smem constant byte address 0x4 - core index']
  #allocation1 [shape = 'u32[144,128]{1,0:T(1,128)}', space=vmem, size = 0x12000, scoped, tag = 'internal scratch']
  %s0 = inlined_call_operand.vmem [shape: f32[8,32], index: 0, kind: input, shape index: {}]
  %s1 = inlined_call_operand.vmem [shape: f32[32,16], index: 1, kind: input, shape index: {}]
  %s2 = inlined_call_operand.vmem [shape: f32[1,16], index: 2, kind: input, shape index: {}]
  %s3 = inlined_call_operand.hbm [shape: f32[8,16], index: 3, kind: output, shape index: {}]
  %s4 = sld [smem:[#allocation0]]
  $region22: #{encoder_forward.1} parent=0
    _
  %s6 = ssub.s32 1, %s4
  %s7 = scalar_select 0, %s6, %s4
  $region1: #{encoder_forward.1} parent=0
    #allocation2 [shape = 'u8[4096]{0}', space=vmem, size = 0x1000, scoped, tag = 'output window, operand 0, single buffered']
    #allocation3 [shape = 's32[1]{0}', space=sflag, size = 0x4, scoped, tag = 'scoped memory for encoder_forward.1']
    %8 = vsyncpa [#allocation3], 0
    // Predicated region
    $region2: #{encoder_forward.1} parent=1 // pred_check
      _
    $region3: #{encoder_forward.1} parent=1 // pred_check_branch
      %10 = sbr.rel (0) target = $region5
    $region4: #{encoder_forward.1} parent=1 // pred_region
      _
    $region5: #{encoder_forward.1} parent=1 // pred_fallthru
      _
    // Predicated region
    $region6: #{encoder_forward.1} parent=1 // pred_check
      _
    $region7: #{encoder_forward.1} parent=1 // pred_check_branch
      %12 = sbr.rel (0) target = $region9
    $region8: #{encoder_forward.1} parent=1 // pred_region
      _
    $region9: #{encoder_forward.1} parent=1 // pred_fallthru
      _
    // Predicated region
    $region10: #{encoder_forward.1} parent=1 // pred_check
      _
    $region11: #{encoder_forward.1} parent=1 // pred_check_branch
      %14 = sbr.rel (0) target = $region13
    $region12: #{encoder_forward.1} parent=1 // pred_region
      _
    $region13: #{encoder_forward.1} parent=1 // pred_fallthru
      _
    %v15 = vld [vmem:[%s0] sm:$0xff]
    %v16 = vld [vmem:[%s1] sm:$0xff]
    %v17 = vld [vmem:[%s1 + $0x8] sm:$0xff]
    %v18 = vld [vmem:[%s1 + $0x10] sm:$0xff]
    %v19 = vld [vmem:[%s1 + $0x18] sm:$0xff]
    %v20 = vld [vmem:[%s2] sm:$0x1]
    %v22 = vlaneseq
    %v23 = vshrl.u32 %v22, 7
    %v24 = vsub.s32 0, %v23
    %v25 = vrot.slane %v20, %v24
    %vm27 = vcmask 261120
    %v29 = vsel %vm27, %v15, 0
    %31 = vmatprep.subr.mxu0 0.0
    %32 = vmatpush1.msra.mxu0 0.0
    %33 = vmatprep.subr.mxu0 0.0
    %34 = vmatpush1.msra.mxu0 0.0
    %35 = vmatprep.subr.mxu0 0.0
    %36 = vmatpush1.msra.mxu0 0.0
    %37 = vmatprep.subr.mxu0 0.0
    %38 = vmatpush1.msra.mxu0 0.0
    %39 = vmatprep.subr.mxu0 0.0
    %40 = vmatpush1.msra.mxu0 0.0
    %41 = vmatprep.subr.mxu0 0.0
    %42 = vmatpush1.msra.mxu0 0.0
    %43 = vmatprep.subr.mxu0 0.0
    %44 = vmatpush1.msra.mxu0 0.0
    %45 = vmatprep.subr.mxu0 0.0
    %46 = vmatpush1.msra.mxu0 0.0
    %47 = vmatprep.subr.mxu0 0.0
    %48 = vmatpush1.msra.mxu0 0.0
    %49 = vmatprep.subr.mxu0 0.0
    %50 = vmatpush1.msra.mxu0 0.0
    %51 = vmatprep.subr.mxu0 0.0
    %52 = vmatpush1.msra.mxu0 0.0
    %53 = vmatprep.subr.mxu0 0.0
    %54 = vmatpush1.msra.mxu0 0.0
    %55 = vmatprep.subr.mxu0 0.0
    %56 = vmatpush1.msra.mxu0 %v19
    %57 = vmatprep.subr.mxu0 0.0
    %58 = vmatpush1.msra.mxu0 %v18
    %59 = vmatprep.subr.mxu0 0.0
    %60 = vmatpush1.msra.mxu0 %v17
    %61 = vmatprep.subr.mxu0 0.0
    %62 = vmatpush1.msra.mxu0 %v16
    %63 = vmatprep.subr.mxu0 0.0
    %64 = vmatpush2.msra.mxu0 0.0
    %65 = vmatprep.subr.mxu0 0.0
    %66 = vmatpush2.msra.mxu0 0.0
    %67 = vmatprep.subr.mxu0 0.0
    %68 = vmatpush2.msra.mxu0 0.0
    %69 = vmatprep.subr.mxu0 0.0
    %70 = vmatpush2.msra.mxu0 0.0
    %71 = vmatprep.subr.mxu0 0.0
    %72 = vmatpush2.msra.mxu0 0.0
    %73 = vmatprep.subr.mxu0 0.0
    %74 = vmatpush2.msra.mxu0 0.0
    %75 = vmatprep.subr.mxu0 0.0
    %76 = vmatpush2.msra.mxu0 0.0
    %77 = vmatprep.subr.mxu0 0.0
    %78 = vmatpush2.msra.mxu0 0.0
    %79 = vmatprep.subr.mxu0 0.0
    %80 = vmatpush2.msra.mxu0 0.0
    %81 = vmatprep.subr.mxu0 0.0
    %82 = vmatpush2.msra.mxu0 0.0
    %83 = vmatprep.subr.mxu0 0.0
    %84 = vmatpush2.msra.mxu0 0.0
    %85 = vmatprep.subr.mxu0 0.0
    %86 = vmatpush2.msra.mxu0 0.0
    %87 = vmatprep.subr.mxu0 0.0
    %88 = vmatpush2.msra.mxu0 0.0
    %89 = vmatprep.subr.mxu0 0.0
    %90 = vmatpush2.msra.mxu0 0.0
    %91 = vmatprep.subr.mxu0 0.0
    %92 = vmatpush2.msra.mxu0 0.0
    %93 = vmatprep.subr.mxu0 0.0
    %94 = vmatpush2.msra.mxu0 0.0
    %95 = vmatprep.mubr.f32.mxu0 0.0
    %96 = vmatmul.mubr.f32.gmra.mxu0 %v29
    %v97 = vpop.f32.mrf.mxu0
    %v98 = vadd.f32 %v25, %v97
    %v99 = vpop.f32.mrf.mxu0
    %100 = vdwg.mxu0
    %v101 = vmul.f32 %v98, 0.2
    %v102 = vmax.f32 %v98, %v101
    %vm103 = vcmask 130048
    %104 = vst.msk [vmem:[#allocation2] sm:$0xff] %vm103, %v102
    // Predicated region
    $region14: #{encoder_forward.1} parent=1 // pred_check
      _
    $region15: #{encoder_forward.1} parent=1 // pred_check_branch
      %106 = sbr.rel (0) target = $region17
    $region16: #{encoder_forward.1} parent=1 // pred_region
      %s108 = ssub.s32 128, 128
      %109 = vsyncadd [#allocation3], %s108
      %s111 = sshll.u32 [#allocation2], 4
      %s112 = int_to_ptr.vmem [resolvable:$true] %s111
      %114 = dma.vmem_to_hbm [thread:$0]  %s112, 128, %s3, [#allocation3]
    $region17: #{encoder_forward.1} parent=1 // pred_fallthru
      _
    // Predicated region
    $region18: #{encoder_forward.1} parent=1 // pred_check
      _
    $region19: #{encoder_forward.1} parent=1 // pred_check_branch
      %116 = sbr.rel (0) target = $region21
    $region20: #{encoder_forward.1} parent=1 // pred_region
      %117 = dma.done [#allocation3], 128
    $region21: #{encoder_forward.1} parent=1 // pred_fallthru
      _
    %118 = vsyncpa [#allocation3], 1

</llo_original>
